<compile_context>
chip_gen: v7x
topology: tpu7x:2x2x1
jax: 0.10.0
libtpu: 0.0.40
codegen_flags: <defaults>
</compile_context>

<pallas_src>
from functools import partial

import jax
import jax.numpy as jnp
from jax.experimental import pallas as pl
from jax.experimental.pallas import tpu as pltpu

EPS = 1e-5
_MR = 8  # sublane-aligned row margin for the h1 staging scratch


def _residual_block_kernel(x_ref, w_ref, p_ref, o_ref, h1_ref, *, B, H, W, C):
    """Fused residual block, lane-dense (rows, W*C) layout throughout.

    x_ref : (B, H+2, W*C)       row-padded input (dense NHWC rows), f32
    w_ref : (2, 3*W*C, W*C)     banded conv weights stacked along K, bf16
    p_ref : (8, W*C)            [b1, g1, be1, b2, g2, be2, 0, 0] replicated, f32
    o_ref : (B*H, W*C)          output, f32
    h1_ref: (B, H+2*_MR, W*C)   f32 scratch staging conv2's +-1-row shifted taps
    """
    WC = W * C
    BH = B * H
    inv_n = 1.0 / float(B * H * W)

    def channel_mean_replicated(v):
        # Per-channel mean over (N, H, W), replicated across the lane-dense
        # layout via a log2(W) XLU roll butterfly (shifts are multiples of C).
        s = jnp.sum(v, axis=0, keepdims=True)            # (1, WC)
        sh = C
        while sh < WC:
            s = s + pltpu.roll(s, sh, axis=1)
            sh *= 2
        return s * inv_n

    def batchnorm(acc, gamma, beta):
        # Numerically-stable two-pass (centered) batch norm, all in f32.
        mu = channel_mean_replicated(acc)
        d = acc - mu
        var = channel_mean_replicated(d * d)             # biased batch variance
        scale = gamma * jax.lax.rsqrt(var + EPS)
        return d * scale + beta

    # ---- conv1: ONE fused K=3*WC bf16 MXU matmul against banded weights -----
    lhs1 = jnp.concatenate(
        [x_ref[:, ky:ky + H, :].reshape(BH, WC).astype(jnp.bfloat16)
         for ky in range(3)], axis=1)                    # (BH, 3*WC) bf16
    acc1 = jnp.dot(lhs1, w_ref[0], preferred_element_type=jnp.float32)
    acc1 = acc1 + p_ref[0:1, :]                          # conv1 bias
    h1 = jnp.maximum(batchnorm(acc1, p_ref[1:2, :], p_ref[2:3, :]), 0.0)

    # ---- stage only the +-1-row shifted taps of h1 through scratch ----------
    h1_ref[:, _MR:_MR + H, :] = h1.reshape(B, H, WC)     # aligned full-width store
    zrow = jnp.zeros((B, 1, WC), jnp.float32)
    h1_ref[:, _MR - 1:_MR, :] = zrow                     # only the two margin rows
    h1_ref[:, _MR + H:_MR + H + 1, :] = zrow             # conv2 actually reads
    prev = h1_ref[:, _MR - 1:_MR - 1 + H, :].reshape(BH, WC)
    nxt = h1_ref[:, _MR + 1:_MR + 1 + H, :].reshape(BH, WC)

    # ---- conv2: ONE fused K=3*WC bf16 MXU matmul (center tap from registers) -
    lhs2 = jnp.concatenate(
        [prev.astype(jnp.bfloat16),
         h1.astype(jnp.bfloat16),
         nxt.astype(jnp.bfloat16)], axis=1)              # (BH, 3*WC) bf16
    acc2 = jnp.dot(lhs2, w_ref[1], preferred_element_type=jnp.float32)
    acc2 = acc2 + p_ref[3:4, :]                          # conv2 bias
    h2 = batchnorm(acc2, p_ref[4:5, :], p_ref[5:6, :])

    # ---- residual add (exact f32 x) + ReLU, lane-dense unmasked store -------
    residual = x_ref[:, 1:1 + H, :].reshape(BH, WC)
    o_ref[...] = jnp.maximum(h2 + residual, 0.0)


def _banded_weights(w_oihw, W):
    """(Cout, Cin, 3, 3) -> (3, W*Cin, W*Cout) banded dense matrices, one per
    kernel row ky; the kx-direction zero padding is encoded in the bands."""
    w = jnp.transpose(w_oihw, (2, 3, 1, 0)).astype(jnp.float32)  # (ky,kx,Cin,Cout)
    rows = []
    for ky in range(3):
        m = None
        for kx in range(3):
            band = jnp.kron(jnp.eye(W, k=1 - kx, dtype=jnp.float32), w[ky, kx])
            m = band if m is None else m + band
        rows.append(m)
    return jnp.stack(rows)                               # (3, W*Cin, W*Cout)


def prepare_residual_block_params(params, W):
    """One-time packing of parameters (hoisted out of the forward pass).

    Returns:
      wband: (2, 3*W*C, W*C) bf16 -- conv1/conv2 banded weights, ky-stacked along K
      pvec : (8, W*C) f32        -- per-channel params replicated lane-dense
    """
    C = params["w1"].shape[1]
    WC = W * C
    wb1 = _banded_weights(params["w1"], W).reshape(3 * WC, WC)
    wb2 = _banded_weights(params["w2"], W).reshape(3 * WC, WC)
    wband = jnp.stack([wb1, wb2]).astype(jnp.bfloat16)   # (2, 3*WC, WC)

    def dense(v):  # (C,) -> (1, W*C), replicated per pixel within a dense row
        return jnp.tile(v.astype(jnp.float32).reshape(1, C), (1, W))

    pvec = jnp.concatenate(
        [dense(params[k]) for k in ("b1", "g1", "be1", "b2", "g2", "be2")]
        + [jnp.zeros((2, WC), jnp.float32)], axis=0)     # (8, WC)
    return wband, pvec


@jax.jit
def residual_block(x_nchw, wband, pvec):
    """Forward pass: NCHW in / NCHW out; weights prepacked by
    prepare_residual_block_params."""
    B, C, H, W = x_nchw.shape
    assert W & (W - 1) == 0, "kernel assumes W is a power of two"
    assert (W * C) % 128 == 0, "kernel assumes lane-dense W*C (multiple of 128)"
    WC = W * C

    # NCHW -> lane-dense NHWC rows (B, H, W*C); pad only the H (row) axis by 1.
    # x stays f32 so the residual add is exact; the MXU LHS is cast to bf16
    # in-register inside the kernel.
    x = jnp.transpose(x_nchw, (0, 2, 3, 1)).astype(jnp.float32).reshape(B, H, WC)
    xpad = jnp.pad(x, ((0, 0), (1, 1), (0, 0)))          # (B, H+2, WC)

    kernel = partial(_residual_block_kernel, B=B, H=H, W=W, C=C)
    out = pl.pallas_call(
        kernel,
        out_shape=jax.ShapeDtypeStruct((B * H, WC), jnp.float32),
        in_specs=[pl.BlockSpec(memory_space=pltpu.MemorySpace.VMEM)] * 3,
        out_specs=pl.BlockSpec(memory_space=pltpu.MemorySpace.VMEM),
        scratch_shapes=[pltpu.VMEM((B, H + 2 * _MR, WC), jnp.float32)],
        compiler_params=pltpu.CompilerParams(vmem_limit_bytes=32 * 1024 * 1024),
    )(xpad, wband, pvec)

    return jnp.transpose(out.reshape(B, H, W, C), (0, 3, 1, 2))       # NCHW


def residual_block_reference(x, p, matmul_dtype=jnp.float32):
    """Pure-JAX reference matching PyTorch semantics (training-mode BN).
    With matmul_dtype=bf16 it mirrors the kernel's operand quantization
    (bf16 conv inputs/weights, f32 accumulation, f32 BN, exact f32 residual)."""
    def conv(h, w, b):
        y = jax.lax.conv_general_dilated(
            h.astype(matmul_dtype), w.astype(matmul_dtype),
            window_strides=(1, 1), padding=((1, 1), (1, 1)),
            dimension_numbers=("NCHW", "OIHW", "NCHW"),
            preferred_element_type=jnp.float32)
        return y + b[None, :, None, None]

    def bn(h, g, be):
        mu = jnp.mean(h, axis=(0, 2, 3), keepdims=True)
        var = jnp.mean((h - mu) ** 2, axis=(0, 2, 3), keepdims=True)
        return (h - mu) * jax.lax.rsqrt(var + EPS) * g[None, :, None, None] \
            + be[None, :, None, None]

    h = jax.nn.relu(bn(conv(x, p["w1"], p["b1"]), p["g1"], p["be1"]))
    h = bn(conv(h, p["w2"], p["b2"]), p["g2"], p["be2"])
    return jax.nn.relu(h + x)


if __name__ == "__main__":
    # stride=1, downsample=None => in_channels == out_channels.
    B, C, H, W = 2, 8, 16, 16          # W*C = 128 (lane-dense)

    key = jax.random.PRNGKey(0)
    keys = jax.random.split(key, 9)
    x = jax.random.normal(keys[0], (B, C, H, W), jnp.float32)

    params = {
        "w1": 0.1 * jax.random.normal(keys[1], (C, C, 3, 3), jnp.float32),
        "b1": 0.1 * jax.random.normal(keys[2], (C,), jnp.float32),
        "g1": 1.0 + 0.1 * jax.random.normal(keys[3], (C,), jnp.float32),
        "be1": 0.1 * jax.random.normal(keys[4], (C,), jnp.float32),
        "w2": 0.1 * jax.random.normal(keys[5], (C, C, 3, 3), jnp.float32),
        "b2": 0.1 * jax.random.normal(keys[6], (C,), jnp.float32),
        "g2": 1.0 + 0.1 * jax.random.normal(keys[7], (C,), jnp.float32),
        "be2": 0.1 * jax.random.normal(keys[8], (C,), jnp.float32),
    }

    # One-time parameter packing (hoisted off the per-call critical path).
    wband, pvec = prepare_residual_block_params(params, W)

    out = jax.block_until_ready(residual_block(x, wband, pvec))
    assert out.shape == (B, C, H, W)

    # Tight structural check vs a reference with matching bf16 MXU operands.
    ref_bf16 = jax.block_until_ready(
        residual_block_reference(x, params, matmul_dtype=jnp.bfloat16))
    err_bf16 = jnp.max(jnp.abs(out - ref_bf16))
    assert jnp.allclose(out, ref_bf16, atol=5e-3, rtol=5e-3), \
        f"bf16-matched reference mismatch: max abs err {err_bf16}"

    # Loose sanity check vs the full-f32 PyTorch-semantics reference
    # (difference is only bf16 operand quantization in the two convs).
    ref_f32 = jax.block_until_ready(residual_block_reference(x, params))
    err_f32 = jnp.max(jnp.abs(out - ref_f32))
    assert jnp.allclose(out, ref_f32, atol=1e-1, rtol=1e-1), \
        f"f32 reference mismatch: max abs err {err_f32}"

    print("KERNEL_OK")
</pallas_src>

<mosaic_0001>
module attributes {stable_mosaic.version = 11 : i64} {
  func.func @_residual_block_kernel(%arg0: memref<2x18x128xf32, #tpu.memory_space<vmem>>, %arg1: memref<2x384x128xbf16, #tpu.memory_space<vmem>>, %arg2: memref<8x128xf32, #tpu.memory_space<vmem>>, %arg3: memref<32x128xf32, #tpu.memory_space<vmem>>, %arg4: memref<2x32x128xf32, #tpu.memory_space<vmem>>) attributes {dimension_semantics = [], scalar_prefetch = 0 : i64, scratch_operands = 1 : i64, tpu.core_type = #tpu.core_type<tc>} {
    %c0 = arith.constant 0 : index
    %c0_0 = arith.constant 0 : index
    %c0_1 = arith.constant 0 : index
    %0 = vector.load %arg0[%c0, %c0_0, %c0_1] : memref<2x18x128xf32, #tpu.memory_space<vmem>>, vector<2x16x128xf32>
    %1 = vector.shape_cast %0 : vector<2x16x128xf32> to vector<32x128xf32>
    %2 = arith.truncf %1 : vector<32x128xf32> to vector<32x128xbf16>
    %c0_2 = arith.constant 0 : index
    %c1 = arith.constant 1 : index
    %c0_3 = arith.constant 0 : index
    %3 = vector.load %arg0[%c0_2, %c1, %c0_3] : memref<2x18x128xf32, #tpu.memory_space<vmem>>, vector<2x16x128xf32>
    %4 = vector.shape_cast %3 : vector<2x16x128xf32> to vector<32x128xf32>
    %5 = arith.truncf %4 : vector<32x128xf32> to vector<32x128xbf16>
    %c0_4 = arith.constant 0 : index
    %c2 = arith.constant 2 : index
    %c0_5 = arith.constant 0 : index
    %6 = vector.load %arg0[%c0_4, %c2, %c0_5] : memref<2x18x128xf32, #tpu.memory_space<vmem>>, vector<2x16x128xf32>
    %7 = vector.shape_cast %6 : vector<2x16x128xf32> to vector<32x128xf32>
    %8 = arith.truncf %7 : vector<32x128xf32> to vector<32x128xbf16>
    %9 = tpu.concatenate %2, %5, %8 in 1 : vector<32x128xbf16>, vector<32x128xbf16>, vector<32x128xbf16> -> vector<32x384xbf16>
    %c0_6 = arith.constant 0 : index
    %c0_7 = arith.constant 0 : index
    %c0_8 = arith.constant 0 : index
    %10 = vector.load %arg1[%c0_6, %c0_7, %c0_8] : memref<2x384x128xbf16, #tpu.memory_space<vmem>>, vector<1x384x128xbf16>
    %11 = vector.shape_cast %10 : vector<1x384x128xbf16> to vector<384x128xbf16>
    %cst = arith.constant dense<0.000000e+00> : vector<32x128xf32>
    %12 = tpu.matmul %9, %11, %cst {dimension_numbers = #tpu.dot_dimension_numbers<[1], [0], [0], [1], [0, 0, 1, 1], [], []>} : vector<32x384xbf16>, vector<384x128xbf16>, vector<32x128xf32> -> vector<32x128xf32>
    %c0_9 = arith.constant 0 : index
    %c0_10 = arith.constant 0 : index
    %13 = vector.load %arg2[%c0_9, %c0_10] : memref<8x128xf32, #tpu.memory_space<vmem>>, vector<1x128xf32>
    %14 = vector.broadcast %13 : vector<1x128xf32> to vector<32x128xf32>
    %15 = arith.addf %12, %14 : vector<32x128xf32>
    %c1_11 = arith.constant 1 : index
    %c0_12 = arith.constant 0 : index
    %16 = vector.load %arg2[%c1_11, %c0_12] : memref<8x128xf32, #tpu.memory_space<vmem>>, vector<1x128xf32>
    %c2_13 = arith.constant 2 : index
    %c0_14 = arith.constant 0 : index
    %17 = vector.load %arg2[%c2_13, %c0_14] : memref<8x128xf32, #tpu.memory_space<vmem>>, vector<1x128xf32>
    %cst_15 = arith.constant dense<0.000000e+00> : vector<128xf32>
    %18 = vector.multi_reduction <add>, %15, %cst_15 [0] : vector<32x128xf32> to vector<128xf32>
    %19 = vector.shape_cast %18 : vector<128xf32> to vector<1x128xf32>
    %c8_i32 = arith.constant 8 : i32
    %20 = tpu.dynamic_rotate %19 by %c8_i32 dim 1 : vector<1x128xf32>, i32 -> vector<1x128xf32>
    %21 = arith.addf %19, %20 : vector<1x128xf32>
    %c16_i32 = arith.constant 16 : i32
    %22 = tpu.dynamic_rotate %21 by %c16_i32 dim 1 : vector<1x128xf32>, i32 -> vector<1x128xf32>
    %23 = arith.addf %21, %22 : vector<1x128xf32>
    %c32_i32 = arith.constant 32 : i32
    %24 = tpu.dynamic_rotate %23 by %c32_i32 dim 1 : vector<1x128xf32>, i32 -> vector<1x128xf32>
    %25 = arith.addf %23, %24 : vector<1x128xf32>
    %c64_i32 = arith.constant 64 : i32
    %26 = tpu.dynamic_rotate %25 by %c64_i32 dim 1 : vector<1x128xf32>, i32 -> vector<1x128xf32>
    %27 = arith.addf %25, %26 : vector<1x128xf32>
    %cst_16 = arith.constant 0.001953125 : f32
    %28 = vector.broadcast %cst_16 : f32 to vector<1x128xf32>
    %29 = arith.mulf %27, %28 : vector<1x128xf32>
    %30 = vector.broadcast %29 : vector<1x128xf32> to vector<32x128xf32>
    %31 = arith.subf %15, %30 : vector<32x128xf32>
    %32 = arith.mulf %31, %31 : vector<32x128xf32>
    %cst_17 = arith.constant dense<0.000000e+00> : vector<128xf32>
    %33 = vector.multi_reduction <add>, %32, %cst_17 [0] : vector<32x128xf32> to vector<128xf32>
    %34 = vector.shape_cast %33 : vector<128xf32> to vector<1x128xf32>
    %c8_i32_18 = arith.constant 8 : i32
    %35 = tpu.dynamic_rotate %34 by %c8_i32_18 dim 1 : vector<1x128xf32>, i32 -> vector<1x128xf32>
    %36 = arith.addf %34, %35 : vector<1x128xf32>
    %c16_i32_19 = arith.constant 16 : i32
    %37 = tpu.dynamic_rotate %36 by %c16_i32_19 dim 1 : vector<1x128xf32>, i32 -> vector<1x128xf32>
    %38 = arith.addf %36, %37 : vector<1x128xf32>
    %c32_i32_20 = arith.constant 32 : i32
    %39 = tpu.dynamic_rotate %38 by %c32_i32_20 dim 1 : vector<1x128xf32>, i32 -> vector<1x128xf32>
    %40 = arith.addf %38, %39 : vector<1x128xf32>
    %c64_i32_21 = arith.constant 64 : i32
    %41 = tpu.dynamic_rotate %40 by %c64_i32_21 dim 1 : vector<1x128xf32>, i32 -> vector<1x128xf32>
    %42 = arith.addf %40, %41 : vector<1x128xf32>
    %cst_22 = arith.constant 0.001953125 : f32
    %43 = vector.broadcast %cst_22 : f32 to vector<1x128xf32>
    %44 = arith.mulf %42, %43 : vector<1x128xf32>
    %cst_23 = arith.constant 9.99999974E-6 : f32
    %45 = vector.broadcast %cst_23 : f32 to vector<1x128xf32>
    %46 = arith.addf %44, %45 : vector<1x128xf32>
    %47 = math.rsqrt %46 : vector<1x128xf32>
    %48 = arith.mulf %16, %47 : vector<1x128xf32>
    %49 = vector.broadcast %48 : vector<1x128xf32> to vector<32x128xf32>
    %50 = arith.mulf %31, %49 : vector<32x128xf32>
    %51 = vector.broadcast %17 : vector<1x128xf32> to vector<32x128xf32>
    %52 = arith.addf %50, %51 : vector<32x128xf32>
    %cst_24 = arith.constant 0.000000e+00 : f32
    %53 = vector.broadcast %cst_24 : f32 to vector<32x128xf32>
    %54 = arith.maximumf %52, %53 : vector<32x128xf32>
    %55 = vector.shape_cast %54 : vector<32x128xf32> to vector<2x16x128xf32>
    %c0_25 = arith.constant 0 : index
    %c8 = arith.constant 8 : index
    %c0_26 = arith.constant 0 : index
    %56 = vector.load %arg4[%c0_25, %c8, %c0_26] : memref<2x32x128xf32, #tpu.memory_space<vmem>>, vector<2x16x128xf32>
    tpu.vector_store %arg4[%c0_25, %c8, %c0_26], %55 {strides = array<i32>} : memref<2x32x128xf32, #tpu.memory_space<vmem>>, vector<2x16x128xf32>,
    %cst_27 = arith.constant 0.000000e+00 : f32
    %57 = vector.broadcast %cst_27 : f32 to vector<2x1x128xf32>
    %c0_28 = arith.constant 0 : index
    %c7 = arith.constant 7 : index
    %c0_29 = arith.constant 0 : index
    %58 = vector.load %arg4[%c0_28, %c7, %c0_29] : memref<2x32x128xf32, #tpu.memory_space<vmem>>, vector<2x1x128xf32>
    tpu.vector_store %arg4[%c0_28, %c7, %c0_29], %57 {strides = array<i32>} : memref<2x32x128xf32, #tpu.memory_space<vmem>>, vector<2x1x128xf32>,
    %c0_30 = arith.constant 0 : index
    %c24 = arith.constant 24 : index
    %c0_31 = arith.constant 0 : index
    %59 = vector.load %arg4[%c0_30, %c24, %c0_31] : memref<2x32x128xf32, #tpu.memory_space<vmem>>, vector<2x1x128xf32>
    tpu.vector_store %arg4[%c0_30, %c24, %c0_31], %57 {strides = array<i32>} : memref<2x32x128xf32, #tpu.memory_space<vmem>>, vector<2x1x128xf32>,
    %c0_32 = arith.constant 0 : index
    %c7_33 = arith.constant 7 : index
    %c0_34 = arith.constant 0 : index
    %60 = vector.load %arg4[%c0_32, %c7_33, %c0_34] : memref<2x32x128xf32, #tpu.memory_space<vmem>>, vector<2x16x128xf32>
    %61 = vector.shape_cast %60 : vector<2x16x128xf32> to vector<32x128xf32>
    %c0_35 = arith.constant 0 : index
    %c9 = arith.constant 9 : index
    %c0_36 = arith.constant 0 : index
    %62 = vector.load %arg4[%c0_35, %c9, %c0_36] : memref<2x32x128xf32, #tpu.memory_space<vmem>>, vector<2x16x128xf32>
    %63 = vector.shape_cast %62 : vector<2x16x128xf32> to vector<32x128xf32>
    %64 = arith.truncf %61 : vector<32x128xf32> to vector<32x128xbf16>
    %65 = arith.truncf %54 : vector<32x128xf32> to vector<32x128xbf16>
    %66 = arith.truncf %63 : vector<32x128xf32> to vector<32x128xbf16>
    %67 = tpu.concatenate %64, %65, %66 in 1 : vector<32x128xbf16>, vector<32x128xbf16>, vector<32x128xbf16> -> vector<32x384xbf16>
    %c1_37 = arith.constant 1 : index
    %c0_38 = arith.constant 0 : index
    %c0_39 = arith.constant 0 : index
    %68 = vector.load %arg1[%c1_37, %c0_38, %c0_39] : memref<2x384x128xbf16, #tpu.memory_space<vmem>>, vector<1x384x128xbf16>
    %69 = vector.shape_cast %68 : vector<1x384x128xbf16> to vector<384x128xbf16>
    %cst_40 = arith.constant dense<0.000000e+00> : vector<32x128xf32>
    %70 = tpu.matmul %67, %69, %cst_40 {dimension_numbers = #tpu.dot_dimension_numbers<[1], [0], [0], [1], [0, 0, 1, 1], [], []>} : vector<32x384xbf16>, vector<384x128xbf16>, vector<32x128xf32> -> vector<32x128xf32>
    %c3 = arith.constant 3 : index
    %c0_41 = arith.constant 0 : index
    %71 = vector.load %arg2[%c3, %c0_41] : memref<8x128xf32, #tpu.memory_space<vmem>>, vector<1x128xf32>
    %72 = vector.broadcast %71 : vector<1x128xf32> to vector<32x128xf32>
    %73 = arith.addf %70, %72 : vector<32x128xf32>
    %c4 = arith.constant 4 : index
    %c0_42 = arith.constant 0 : index
    %74 = vector.load %arg2[%c4, %c0_42] : memref<8x128xf32, #tpu.memory_space<vmem>>, vector<1x128xf32>
    %c5 = arith.constant 5 : index
    %c0_43 = arith.constant 0 : index
    %75 = vector.load %arg2[%c5, %c0_43] : memref<8x128xf32, #tpu.memory_space<vmem>>, vector<1x128xf32>
    %cst_44 = arith.constant dense<0.000000e+00> : vector<128xf32>
    %76 = vector.multi_reduction <add>, %73, %cst_44 [0] : vector<32x128xf32> to vector<128xf32>
    %77 = vector.shape_cast %76 : vector<128xf32> to vector<1x128xf32>
    %c8_i32_45 = arith.constant 8 : i32
    %78 = tpu.dynamic_rotate %77 by %c8_i32_45 dim 1 : vector<1x128xf32>, i32 -> vector<1x128xf32>
    %79 = arith.addf %77, %78 : vector<1x128xf32>
    %c16_i32_46 = arith.constant 16 : i32
    %80 = tpu.dynamic_rotate %79 by %c16_i32_46 dim 1 : vector<1x128xf32>, i32 -> vector<1x128xf32>
    %81 = arith.addf %79, %80 : vector<1x128xf32>
    %c32_i32_47 = arith.constant 32 : i32
    %82 = tpu.dynamic_rotate %81 by %c32_i32_47 dim 1 : vector<1x128xf32>, i32 -> vector<1x128xf32>
    %83 = arith.addf %81, %82 : vector<1x128xf32>
    %c64_i32_48 = arith.constant 64 : i32
    %84 = tpu.dynamic_rotate %83 by %c64_i32_48 dim 1 : vector<1x128xf32>, i32 -> vector<1x128xf32>
    %85 = arith.addf %83, %84 : vector<1x128xf32>
    %cst_49 = arith.constant 0.001953125 : f32
    %86 = vector.broadcast %cst_49 : f32 to vector<1x128xf32>
    %87 = arith.mulf %85, %86 : vector<1x128xf32>
    %88 = vector.broadcast %87 : vector<1x128xf32> to vector<32x128xf32>
    %89 = arith.subf %73, %88 : vector<32x128xf32>
    %90 = arith.mulf %89, %89 : vector<32x128xf32>
    %cst_50 = arith.constant dense<0.000000e+00> : vector<128xf32>
    %91 = vector.multi_reduction <add>, %90, %cst_50 [0] : vector<32x128xf32> to vector<128xf32>
    %92 = vector.shape_cast %91 : vector<128xf32> to vector<1x128xf32>
    %c8_i32_51 = arith.constant 8 : i32
    %93 = tpu.dynamic_rotate %92 by %c8_i32_51 dim 1 : vector<1x128xf32>, i32 -> vector<1x128xf32>
    %94 = arith.addf %92, %93 : vector<1x128xf32>
    %c16_i32_52 = arith.constant 16 : i32
    %95 = tpu.dynamic_rotate %94 by %c16_i32_52 dim 1 : vector<1x128xf32>, i32 -> vector<1x128xf32>
    %96 = arith.addf %94, %95 : vector<1x128xf32>
    %c32_i32_53 = arith.constant 32 : i32
    %97 = tpu.dynamic_rotate %96 by %c32_i32_53 dim 1 : vector<1x128xf32>, i32 -> vector<1x128xf32>
    %98 = arith.addf %96, %97 : vector<1x128xf32>
    %c64_i32_54 = arith.constant 64 : i32
    %99 = tpu.dynamic_rotate %98 by %c64_i32_54 dim 1 : vector<1x128xf32>, i32 -> vector<1x128xf32>
    %100 = arith.addf %98, %99 : vector<1x128xf32>
    %cst_55 = arith.constant 0.001953125 : f32
    %101 = vector.broadcast %cst_55 : f32 to vector<1x128xf32>
    %102 = arith.mulf %100, %101 : vector<1x128xf32>
    %cst_56 = arith.constant 9.99999974E-6 : f32
    %103 = vector.broadcast %cst_56 : f32 to vector<1x128xf32>
    %104 = arith.addf %102, %103 : vector<1x128xf32>
    %105 = math.rsqrt %104 : vector<1x128xf32>
    %106 = arith.mulf %74, %105 : vector<1x128xf32>
    %107 = vector.broadcast %106 : vector<1x128xf32> to vector<32x128xf32>
    %108 = arith.mulf %89, %107 : vector<32x128xf32>
    %109 = vector.broadcast %75 : vector<1x128xf32> to vector<32x128xf32>
    %110 = arith.addf %108, %109 : vector<32x128xf32>
    %c0_57 = arith.constant 0 : index
    %c1_58 = arith.constant 1 : index
    %c0_59 = arith.constant 0 : index
    %111 = vector.load %arg0[%c0_57, %c1_58, %c0_59] : memref<2x18x128xf32, #tpu.memory_space<vmem>>, vector<2x16x128xf32>
    %112 = vector.shape_cast %111 : vector<2x16x128xf32> to vector<32x128xf32>
    %113 = arith.addf %110, %112 : vector<32x128xf32>
    %cst_60 = arith.constant 0.000000e+00 : f32
    %114 = vector.broadcast %cst_60 : f32 to vector<32x128xf32>
    %115 = arith.maximumf %113, %114 : vector<32x128xf32>
    %c0_61 = arith.constant 0 : index
    %c0_62 = arith.constant 0 : index
    %116 = vector.load %arg3[%c0_61, %c0_62] : memref<32x128xf32, #tpu.memory_space<vmem>>, vector<32x128xf32>
    tpu.vector_store %arg3[%c0_61, %c0_62], %115 {strides = array<i32>} : memref<32x128xf32, #tpu.memory_space<vmem>>, vector<32x128xf32>,
    return
  }
}

</mosaic_0001>

<llo_original>
// kernel: residual_block.1
$region0: #{residual_block.1}
  #allocation0 [shape = 'u32[]', space=smem, size = 0x4, offset = 0x4, fixed_abs, tag = 'smem constant byte address 0x4 - core index']
  #allocation1 [shape = 'u32[144,128]{1,0:T(1,128)}', space=vmem, size = 0x12000, scoped, tag = 'internal scratch']
  #allocation2 [shape = 'f32[2,32,128]{2,1,0:T(8,128)}', space=vmem, size = 0x8000, scoped, tag = 'scratch operand']
  %s0 = inlined_call_operand.vmem [shape: f32[2,18,128], index: 0, kind: input, shape index: {}]
  %s1 = inlined_call_operand.vmem [shape: bf16[2,384,128], index: 1, kind: input, shape index: {}]
  %s2 = inlined_call_operand.vmem [shape: f32[8,128], index: 2, kind: input, shape index: {}]
  %s3 = inlined_call_operand.vmem [shape: f32[32,128], index: 3, kind: output, shape index: {}]
  %s4 = sld [smem:[#allocation0]]
  $region22: #{residual_block.1} parent=0
    _
  %s6 = ssub.s32 1, %s4
  %s7 = scalar_select 0, %s6, %s4
  // Predicated region
  $region2: #{residual_block.1} parent=0 // pred_check
    _
  $region3: #{residual_block.1} parent=0 // pred_check_branch
    %9 = sbr.rel (0) target = $region5
  $region4: #{residual_block.1} parent=0 // pred_region
    _
  $region5: #{residual_block.1} parent=0 // pred_fallthru
    _
  // Predicated region
  $region6: #{residual_block.1} parent=0 // pred_check
    _
  $region7: #{residual_block.1} parent=0 // pred_check_branch
    %11 = sbr.rel (0) target = $region9
  $region8: #{residual_block.1} parent=0 // pred_region
    _
  $region9: #{residual_block.1} parent=0 // pred_fallthru
    _
  // Predicated region
  $region10: #{residual_block.1} parent=0 // pred_check
    _
  $region11: #{residual_block.1} parent=0 // pred_check_branch
    %13 = sbr.rel (0) target = $region13
  $region12: #{residual_block.1} parent=0 // pred_region
    _
  $region13: #{residual_block.1} parent=0 // pred_fallthru
    _
  %v15 = vld [vmem:[%s0] sm:$0xff]
  %v16 = vld [vmem:[%s0 + $0x8] sm:$0xff]
  %v17 = vld [vmem:[%s0 + $0x18] sm:$0xff]
  %v18 = vld [vmem:[%s0 + $0x20] sm:$0xff]
  %v19 = vpack.c.bf16 %v16, %v15
  %v20 = vpack.c.bf16 %v18, %v17
  %v21 = vld [vmem:[%s0 + $0x1] sm:$0xff]
  %v22 = vld [vmem:[%s0 + $0x9] sm:$0xff]
  %v23 = vld [vmem:[%s0 + $0x19] sm:$0xff]
  %v24 = vld [vmem:[%s0 + $0x21] sm:$0xff]
  %v25 = vpack.c.bf16 %v22, %v21
  %v26 = vpack.c.bf16 %v24, %v23
  %v27 = vld [vmem:[%s0 + $0x2] sm:$0xff]
  %v28 = vld [vmem:[%s0 + $0xa] sm:$0xff]
  %v29 = vld [vmem:[%s0 + $0x1a] sm:$0xff]
  %v30 = vld [vmem:[%s0 + $0x22] sm:$0xff]
  %v31 = vpack.c.bf16 %v28, %v27
  %v32 = vpack.c.bf16 %v30, %v29
  %v33 = vld [vmem:[%s1] sm:$0xf]
  %v34 = vld [vmem:[%s1 + $0x4] sm:$0xf]
  %v35 = vld [vmem:[%s1 + $0x8] sm:$0xf]
  %v36 = vld [vmem:[%s1 + $0xc] sm:$0xf]
  %v37 = vld [vmem:[%s1 + $0x10] sm:$0xf]
  %v38 = vld [vmem:[%s1 + $0x14] sm:$0xf]
  %v39 = vld [vmem:[%s1 + $0x18] sm:$0xf]
  %v40 = vld [vmem:[%s1 + $0x1c] sm:$0xf]
  %v41 = vld [vmem:[%s1 + $0x20] sm:$0xf]
  %v42 = vld [vmem:[%s1 + $0x24] sm:$0xf]
  %v43 = vld [vmem:[%s1 + $0x28] sm:$0xf]
  %v44 = vld [vmem:[%s1 + $0x2c] sm:$0xf]
  %v45 = vld [vmem:[%s1 + $0x30] sm:$0xf]
  %v46 = vld [vmem:[%s1 + $0x34] sm:$0xf]
  %v47 = vld [vmem:[%s1 + $0x38] sm:$0xf]
  %v48 = vld [vmem:[%s1 + $0x3c] sm:$0xf]
  %v49 = vld [vmem:[%s1 + $0x40] sm:$0xf]
  %v50 = vld [vmem:[%s1 + $0x44] sm:$0xf]
  %v51 = vld [vmem:[%s1 + $0x48] sm:$0xf]
  %v52 = vld [vmem:[%s1 + $0x4c] sm:$0xf]
  %v53 = vld [vmem:[%s1 + $0x50] sm:$0xf]
  %v54 = vld [vmem:[%s1 + $0x54] sm:$0xf]
  %v55 = vld [vmem:[%s1 + $0x58] sm:$0xf]
  %v56 = vld [vmem:[%s1 + $0x5c] sm:$0xf]
  %v57 = vld [vmem:[%s1 + $0x60] sm:$0xf]
  %v58 = vld [vmem:[%s1 + $0x64] sm:$0xf]
  %v59 = vld [vmem:[%s1 + $0x68] sm:$0xf]
  %v60 = vld [vmem:[%s1 + $0x6c] sm:$0xf]
  %v61 = vld [vmem:[%s1 + $0x70] sm:$0xf]
  %v62 = vld [vmem:[%s1 + $0x74] sm:$0xf]
  %v63 = vld [vmem:[%s1 + $0x78] sm:$0xf]
  %v64 = vld [vmem:[%s1 + $0x7c] sm:$0xf]
  %v65 = vld [vmem:[%s1 + $0x80] sm:$0xf]
  %v66 = vld [vmem:[%s1 + $0x84] sm:$0xf]
  %v67 = vld [vmem:[%s1 + $0x88] sm:$0xf]
  %v68 = vld [vmem:[%s1 + $0x8c] sm:$0xf]
  %v69 = vld [vmem:[%s1 + $0x90] sm:$0xf]
  %v70 = vld [vmem:[%s1 + $0x94] sm:$0xf]
  %v71 = vld [vmem:[%s1 + $0x98] sm:$0xf]
  %v72 = vld [vmem:[%s1 + $0x9c] sm:$0xf]
  %v73 = vld [vmem:[%s1 + $0xa0] sm:$0xf]
  %v74 = vld [vmem:[%s1 + $0xa4] sm:$0xf]
  %v75 = vld [vmem:[%s1 + $0xa8] sm:$0xf]
  %v76 = vld [vmem:[%s1 + $0xac] sm:$0xf]
  %v77 = vld [vmem:[%s1 + $0xb0] sm:$0xf]
  %v78 = vld [vmem:[%s1 + $0xb4] sm:$0xf]
  %v79 = vld [vmem:[%s1 + $0xb8] sm:$0xf]
  %v80 = vld [vmem:[%s1 + $0xbc] sm:$0xf]
  %v81 = vld [vmem:[%s2] sm:$0x1]
  %v82 = vlaneseq
  %v83 = vshrl.u32 %v82, 7
  %v84 = vsub.s32 0, %v83
  %v85 = vrot.slane %v81, %v84
  %v134 = vunpack.c.l.b16 %v33
  %v135 = vunpack.c.l.b16 %v34
  %v136 = vunpack.c.l.b16 %v35
  %v137 = vunpack.c.l.b16 %v36
  %v138 = vunpack.c.l.b16 %v37
  %v139 = vunpack.c.l.b16 %v38
  %v140 = vunpack.c.l.b16 %v39
  %v141 = vunpack.c.l.b16 %v40
  %v142 = vunpack.c.l.b16 %v41
  %v143 = vunpack.c.l.b16 %v42
  %v144 = vunpack.c.l.b16 %v43
  %v145 = vunpack.c.l.b16 %v44
  %v146 = vunpack.c.l.b16 %v45
  %v147 = vunpack.c.l.b16 %v46
  %v148 = vunpack.c.l.b16 %v47
  %v149 = vunpack.c.l.b16 %v48
  %v150 = vunpack.c.l.b16 %v49
  %v151 = vunpack.c.l.b16 %v50
  %v152 = vunpack.c.l.b16 %v51
  %v153 = vunpack.c.l.b16 %v52
  %v154 = vunpack.c.l.b16 %v53
  %v155 = vunpack.c.l.b16 %v54
  %v156 = vunpack.c.l.b16 %v55
  %v157 = vunpack.c.l.b16 %v56
  %v158 = vunpack.c.l.b16 %v57
  %v159 = vunpack.c.l.b16 %v58
  %v160 = vunpack.c.l.b16 %v59
  %v161 = vunpack.c.l.b16 %v60
  %v162 = vunpack.c.l.b16 %v61
  %v163 = vunpack.c.l.b16 %v62
  %v164 = vunpack.c.l.b16 %v63
  %v165 = vunpack.c.l.b16 %v64
  %v166 = vunpack.c.l.b16 %v65
  %v167 = vunpack.c.l.b16 %v66
  %v168 = vunpack.c.l.b16 %v67
  %v169 = vunpack.c.l.b16 %v68
  %v170 = vunpack.c.l.b16 %v69
  %v171 = vunpack.c.l.b16 %v70
  %v172 = vunpack.c.l.b16 %v71
  %v173 = vunpack.c.l.b16 %v72
  %v174 = vunpack.c.l.b16 %v73
  %v175 = vunpack.c.l.b16 %v74
  %v176 = vunpack.c.l.b16 %v75
  %v177 = vunpack.c.l.b16 %v76
  %v178 = vunpack.c.l.b16 %v77
  %v179 = vunpack.c.l.b16 %v78
  %v180 = vunpack.c.l.b16 %v79
  %v181 = vunpack.c.l.b16 %v80
  %v182 = vpack.c.b16 %v135, %v134
  %v183 = vpack.c.b16 %v137, %v136
  %v184 = vpack.c.b16 %v139, %v138
  %v185 = vpack.c.b16 %v141, %v140
  %v186 = vpack.c.b16 %v143, %v142
  %v187 = vpack.c.b16 %v145, %v144
  %v188 = vpack.c.b16 %v147, %v146
  %v189 = vpack.c.b16 %v149, %v148
  %v190 = vpack.c.b16 %v151, %v150
  %v191 = vpack.c.b16 %v153, %v152
  %v192 = vpack.c.b16 %v155, %v154
  %v193 = vpack.c.b16 %v157, %v156
  %v194 = vpack.c.b16 %v159, %v158
  %v195 = vpack.c.b16 %v161, %v160
  %v196 = vpack.c.b16 %v163, %v162
  %v197 = vpack.c.b16 %v165, %v164
  %v198 = vpack.c.b16 %v167, %v166
  %v199 = vpack.c.b16 %v169, %v168
  %v200 = vpack.c.b16 %v171, %v170
  %v201 = vpack.c.b16 %v173, %v172
  %v202 = vpack.c.b16 %v175, %v174
  %v203 = vpack.c.b16 %v177, %v176
  %v204 = vpack.c.b16 %v179, %v178
  %v205 = vpack.c.b16 %v181, %v180
  %230 = vmatprep.subr.bf16.mxu0 0
  %231 = vmatpush1.bf16.msra.mxu0 %v182
  %232 = vmatprep.subr.bf16.mxu0 0
  %233 = vmatpush1.bf16.msra.mxu0 %v183
  %234 = vmatprep.subr.bf16.mxu0 0
  %235 = vmatpush1.bf16.msra.mxu0 %v184
  %236 = vmatprep.subr.bf16.mxu0 0
  %237 = vmatpush1.bf16.msra.mxu0 %v185
  %238 = vmatprep.subr.bf16.mxu0 0
  %239 = vmatpush1.bf16.msra.mxu0 %v186
  %240 = vmatprep.subr.bf16.mxu0 0
  %241 = vmatpush1.bf16.msra.mxu0 %v187
  %242 = vmatprep.subr.bf16.mxu0 0
  %243 = vmatpush1.bf16.msra.mxu0 %v188
  %244 = vmatprep.subr.bf16.mxu0 0
  %245 = vmatpush1.bf16.msra.mxu0 %v189
  %246 = vmatprep.subr.bf16.mxu0 0
  %247 = vmatpush1.bf16.msra.mxu0 %v190
  %248 = vmatprep.subr.bf16.mxu0 0
  %249 = vmatpush1.bf16.msra.mxu0 %v191
  %250 = vmatprep.subr.bf16.mxu0 0
  %251 = vmatpush1.bf16.msra.mxu0 %v192
  %252 = vmatprep.subr.bf16.mxu0 0
  %253 = vmatpush1.bf16.msra.mxu0 %v193
  %254 = vmatprep.subr.bf16.mxu0 0
  %255 = vmatpush1.bf16.msra.mxu0 %v194
  %256 = vmatprep.subr.bf16.mxu0 0
  %257 = vmatpush1.bf16.msra.mxu0 %v195
  %258 = vmatprep.subr.bf16.mxu0 0
  %259 = vmatpush1.bf16.msra.mxu0 %v196
  %260 = vmatprep.subr.bf16.mxu0 0
  %261 = vmatpush1.bf16.msra.mxu0 %v197
  %262 = vmatprep.mubr.bf16.mxu0 %v25
  %263 = vmatmul.mubr.bf16.gmra.mrb[0].mxu0 %v19
  %v264 = vpop.f32.mrb[0].mxu0
  %v265 = vadd.f32 %v85, %v264
  %v266 = vpop.f32.mrb[0].mxu0
  %v267 = vpop.f32.mrb[0].mxu0
  %v268 = vadd.f32 %v85, %v267
  %v269 = vpop.f32.mrb[0].mxu0
  %270 = vmatprep.mubr.bf16.mxu0 %v26
  %271 = vmatmul.mubr.bf16.gmra.mrb[0].mxu0 %v20
  %v272 = vpop.f32.mrb[0].mxu0
  %v273 = vadd.f32 %v85, %v272
  %v274 = vpop.f32.mrb[0].mxu0
  %v275 = vpop.f32.mrb[0].mxu0
  %v276 = vadd.f32 %v85, %v275
  %v277 = vpop.f32.mrb[0].mxu0
  %278 = vdwg.mxu0
  %279 = vmatprep.subr.bf16.mxu0 0
  %280 = vmatpush1.bf16.msra.mxu0 %v198
  %281 = vmatprep.subr.bf16.mxu0 0
  %282 = vmatpush1.bf16.msra.mxu0 %v199
  %283 = vmatprep.subr.bf16.mxu0 0
  %284 = vmatpush1.bf16.msra.mxu0 %v200
  %285 = vmatprep.subr.bf16.mxu0 0
  %286 = vmatpush1.bf16.msra.mxu0 %v201
  %287 = vmatprep.subr.bf16.mxu0 0
  %288 = vmatpush1.bf16.msra.mxu0 %v202
  %289 = vmatprep.subr.bf16.mxu0 0
  %290 = vmatpush1.bf16.msra.mxu0 %v203
  %291 = vmatprep.subr.bf16.mxu0 0
  %292 = vmatpush1.bf16.msra.mxu0 %v204
  %293 = vmatprep.subr.bf16.mxu0 0
  %294 = vmatpush1.bf16.msra.mxu0 %v205
  %295 = vmatprep.subr.bf16.mxu0 0
  %296 = vmatpush1.bf16.msra.mxu0 0
  %297 = vmatprep.subr.bf16.mxu0 0
  %298 = vmatpush1.bf16.msra.mxu0 0
  %299 = vmatprep.subr.bf16.mxu0 0
  %300 = vmatpush1.bf16.msra.mxu0 0
  %301 = vmatprep.subr.bf16.mxu0 0
  %302 = vmatpush1.bf16.msra.mxu0 0
  %303 = vmatprep.subr.bf16.mxu0 0
  %304 = vmatpush1.bf16.msra.mxu0 0
  %305 = vmatprep.subr.bf16.mxu0 0
  %306 = vmatpush1.bf16.msra.mxu0 0
  %307 = vmatprep.subr.bf16.mxu0 0
  %308 = vmatpush1.bf16.msra.mxu0 0
  %309 = vmatprep.subr.bf16.mxu0 0
  %310 = vmatpush1.bf16.msra.mxu0 0
  %311 = vmatprep.mubr.bf16.mxu0 0
  %312 = vmatmul.mubr.bf16.gmra.mrb[0].mxu0 %v31
  %v313 = vpop.f32.mrb[0].mxu0
  %v314 = vadd.f32 %v265, %v313
  %v315 = vpop.f32.mrb[0].mxu0
  %v316 = vpop.f32.mrb[0].mxu0
  %v317 = vadd.f32 %v268, %v316
  %v318 = vpop.f32.mrb[0].mxu0
  %319 = vmatprep.mubr.bf16.mxu0 0
  %320 = vmatmul.mubr.bf16.gmra.mrb[0].mxu0 %v32
  %v321 = vpop.f32.mrb[0].mxu0
  %v322 = vadd.f32 %v273, %v321
  %v323 = vpop.f32.mrb[0].mxu0
  %v324 = vpop.f32.mrb[0].mxu0
  %v325 = vadd.f32 %v276, %v324
  %v326 = vpop.f32.mrb[0].mxu0
  %327 = vdwg.mxu0
  %v328 = vld [vmem:[%s2 + $0x1] sm:$0x1]
  %v329 = vld [vmem:[%s2 + $0x2] sm:$0x1]
  %v330 = vadd.f32 %v314, %v317
  %v331 = vadd.f32 %v330, %v322
  %v332 = vadd.f32 %v331, %v325
  %v333 = vrot.slane %v332, 4
  %v334 = vadd.f32 %v332, %v333
  %v335 = vrot.slane %v334, 2
  %v336 = vadd.f32 %v334, %v335
  %v337 = vrot.slane %v336, 1
  %v338 = vadd.f32 %v336, %v337
  %339 = vrot.lane.b32.xlu0 %v338, 8
  %v340 = vpop.permute.xlu0 %339
  %v341 = vadd.f32 %v338, %v340
  %342 = vrot.lane.b32.xlu0 %v341, 16
  %v343 = vpop.permute.xlu0 %342
  %v344 = vadd.f32 %v341, %v343
  %345 = vrot.lane.b32.xlu0 %v344, 32
  %v346 = vpop.permute.xlu0 %345
  %v347 = vadd.f32 %v344, %v346
  %348 = vrot.lane.b32.xlu0 %v347, 64
  %v349 = vpop.permute.xlu0 %348
  %v350 = vadd.f32 %v347, %v349
  %v351 = vmul.f32 %v350, 0.001953125
  %v352 = vlaneseq
  %v353 = vshrl.u32 %v352, 7
  %v354 = vsub.s32 0, %v353
  %v355 = vrot.slane %v351, %v354
  %v356 = vsub.f32 %v314, %v355
  %v357 = vsub.f32 %v317, %v355
  %v358 = vsub.f32 %v322, %v355
  %v359 = vsub.f32 %v325, %v355
  %v360 = vmul.f32 %v356, %v356
  %v361 = vmul.f32 %v357, %v357
  %v362 = vmul.f32 %v358, %v358
  %v363 = vmul.f32 %v359, %v359
  %v364 = vadd.f32 %v360, %v361
  %v365 = vadd.f32 %v364, %v362
  %v366 = vadd.f32 %v365, %v363
  %v367 = vrot.slane %v366, 4
  %v368 = vadd.f32 %v366, %v367
  %v369 = vrot.slane %v368, 2
  %v370 = vadd.f32 %v368, %v369
  %v371 = vrot.slane %v370, 1
  %v372 = vadd.f32 %v370, %v371
  %373 = vrot.lane.b32.xlu0 %v372, 8
  %v374 = vpop.permute.xlu0 %373
  %v375 = vadd.f32 %v372, %v374
  %376 = vrot.lane.b32.xlu0 %v375, 16
  %v377 = vpop.permute.xlu0 %376
  %v378 = vadd.f32 %v375, %v377
  %379 = vrot.lane.b32.xlu0 %v378, 32
  %v380 = vpop.permute.xlu0 %379
  %v381 = vadd.f32 %v378, %v380
  %382 = vrot.lane.b32.xlu0 %v381, 64
  %v383 = vpop.permute.xlu0 %382
  %v384 = vadd.f32 %v381, %v383
  %v385 = vmul.f32 %v384, 0.001953125
  %v386 = vadd.f32 %v385, 1e-05
  %v387 = vrsqrt.pop %v386
  %v388 = vmul.f32 %v328, %v387
  %v389 = vlaneseq
  %v390 = vshrl.u32 %v389, 7
  %v391 = vsub.s32 0, %v390
  %v392 = vrot.slane %v388, %v391
  %v393 = vmul.f32 %v356, %v392
  %v394 = vmul.f32 %v357, %v392
  %v395 = vmul.f32 %v358, %v392
  %v396 = vmul.f32 %v359, %v392
  %v397 = vlaneseq
  %v398 = vshrl.u32 %v397, 7
  %v399 = vsub.s32 0, %v398
  %v400 = vrot.slane %v329, %v399
  %v401 = vadd.f32 %v393, %v400
  %v402 = vadd.f32 %v394, %v400
  %v403 = vadd.f32 %v395, %v400
  %v404 = vadd.f32 %v396, %v400
  %v405 = vmax.f32 %v401, 0.0
  %v406 = vmax.f32 %v402, 0.0
  %v407 = vmax.f32 %v403, 0.0
  %v408 = vmax.f32 %v404, 0.0
  %409 = vst [vmem:[#allocation2 + $0x8] sm:$0xff] %v405
  %410 = vst [vmem:[#allocation2 + $0x10] sm:$0xff] %v406
  %411 = vst [vmem:[#allocation2 + $0x28] sm:$0xff] %v407
  %412 = vst [vmem:[#allocation2 + $0x30] sm:$0xff] %v408
  %413 = vst [vmem:[#allocation2 + $0x7] sm:$0x1] 0.0
  %414 = vst [vmem:[#allocation2 + $0x27] sm:$0x1] 0.0
  %415 = vst [vmem:[#allocation2 + $0x18] sm:$0x1] 0.0
  %416 = vst [vmem:[#allocation2 + $0x38] sm:$0x1] 0.0
  %v417 = vld [vmem:[#allocation2 + $0x7] sm:$0xff]
  %v418 = vld [vmem:[#allocation2 + $0xf] sm:$0xff]
  %v419 = vld [vmem:[#allocation2 + $0x27] sm:$0xff]
  %v420 = vld [vmem:[#allocation2 + $0x2f] sm:$0xff]
  %v421 = vld [vmem:[#allocation2 + $0x9] sm:$0xff]
  %v422 = vld [vmem:[#allocation2 + $0x11] sm:$0xff]
  %v423 = vld [vmem:[#allocation2 + $0x29] sm:$0xff]
  %v424 = vld [vmem:[#allocation2 + $0x31] sm:$0xff]
  %v425 = vpack.c.bf16 %v418, %v417
  %v426 = vpack.c.bf16 %v420, %v419
  %v427 = vpack.c.bf16 %v406, %v405
  %v428 = vpack.c.bf16 %v408, %v407
  %v429 = vpack.c.bf16 %v422, %v421
  %v430 = vpack.c.bf16 %v424, %v423
  %s431 = scalar_lea.vmem %s1, 192
  %v432 = vld [vmem:[%s431] sm:$0xf]
  %v433 = vld [vmem:[%s431 + $0x4] sm:$0xf]
  %v434 = vld [vmem:[%s431 + $0x8] sm:$0xf]
  %v435 = vld [vmem:[%s431 + $0xc] sm:$0xf]
  %v436 = vld [vmem:[%s431 + $0x10] sm:$0xf]
  %v437 = vld [vmem:[%s431 + $0x14] sm:$0xf]
  %v438 = vld [vmem:[%s431 + $0x18] sm:$0xf]
  %v439 = vld [vmem:[%s431 + $0x1c] sm:$0xf]
  %v440 = vld [vmem:[%s431 + $0x20] sm:$0xf]
  %v441 = vld [vmem:[%s431 + $0x24] sm:$0xf]
  %v442 = vld [vmem:[%s431 + $0x28] sm:$0xf]
  %v443 = vld [vmem:[%s431 + $0x2c] sm:$0xf]
  %v444 = vld [vmem:[%s431 + $0x30] sm:$0xf]
  %v445 = vld [vmem:[%s431 + $0x34] sm:$0xf]
  %v446 = vld [vmem:[%s431 + $0x38] sm:$0xf]
  %v447 = vld [vmem:[%s431 + $0x3c] sm:$0xf]
  %v448 = vld [vmem:[%s431 + $0x40] sm:$0xf]
  %v449 = vld [vmem:[%s431 + $0x44] sm:$0xf]
  %v450 = vld [vmem:[%s431 + $0x48] sm:$0xf]
  %v451 = vld [vmem:[%s431 + $0x4c] sm:$0xf]
  %v452 = vld [vmem:[%s431 + $0x50] sm:$0xf]
  %v453 = vld [vmem:[%s431 + $0x54] sm:$0xf]
  %v454 = vld [vmem:[%s431 + $0x58] sm:$0xf]
  %v455 = vld [vmem:[%s431 + $0x5c] sm:$0xf]
  %v456 = vld [vmem:[%s431 + $0x60] sm:$0xf]
  %v457 = vld [vmem:[%s431 + $0x64] sm:$0xf]
  %v458 = vld [vmem:[%s431 + $0x68] sm:$0xf]
  %v459 = vld [vmem:[%s431 + $0x6c] sm:$0xf]
  %v460 = vld [vmem:[%s431 + $0x70] sm:$0xf]
  %v461 = vld [vmem:[%s431 + $0x74] sm:$0xf]
  %v462 = vld [vmem:[%s431 + $0x78] sm:$0xf]
  %v463 = vld [vmem:[%s431 + $0x7c] sm:$0xf]
  %v464 = vld [vmem:[%s431 + $0x80] sm:$0xf]
  %v465 = vld [vmem:[%s431 + $0x84] sm:$0xf]
  %v466 = vld [vmem:[%s431 + $0x88] sm:$0xf]
  %v467 = vld [vmem:[%s431 + $0x8c] sm:$0xf]
  %v468 = vld [vmem:[%s431 + $0x90] sm:$0xf]
  %v469 = vld [vmem:[%s431 + $0x94] sm:$0xf]
  %v470 = vld [vmem:[%s431 + $0x98] sm:$0xf]
  %v471 = vld [vmem:[%s431 + $0x9c] sm:$0xf]
  %v472 = vld [vmem:[%s431 + $0xa0] sm:$0xf]
  %v473 = vld [vmem:[%s431 + $0xa4] sm:$0xf]
  %v474 = vld [vmem:[%s431 + $0xa8] sm:$0xf]
  %v475 = vld [vmem:[%s431 + $0xac] sm:$0xf]
  %v476 = vld [vmem:[%s431 + $0xb0] sm:$0xf]
  %v477 = vld [vmem:[%s431 + $0xb4] sm:$0xf]
  %v478 = vld [vmem:[%s431 + $0xb8] sm:$0xf]
  %v479 = vld [vmem:[%s431 + $0xbc] sm:$0xf]
  %v480 = vld [vmem:[%s2 + $0x3] sm:$0x1]
  %v481 = vlaneseq
  %v482 = vshrl.u32 %v481, 7
  %v483 = vsub.s32 0, %v482
  %v484 = vrot.slane %v480, %v483
  %v533 = vunpack.c.l.b16 %v432
  %v534 = vunpack.c.l.b16 %v433
  %v535 = vunpack.c.l.b16 %v434
  %v536 = vunpack.c.l.b16 %v435
  %v537 = vunpack.c.l.b16 %v436
  %v538 = vunpack.c.l.b16 %v437
  %v539 = vunpack.c.l.b16 %v438
  %v540 = vunpack.c.l.b16 %v439
  %v541 = vunpack.c.l.b16 %v440
  %v542 = vunpack.c.l.b16 %v441
  %v543 = vunpack.c.l.b16 %v442
  %v544 = vunpack.c.l.b16 %v443
  %v545 = vunpack.c.l.b16 %v444
  %v546 = vunpack.c.l.b16 %v445
  %v547 = vunpack.c.l.b16 %v446
  %v548 = vunpack.c.l.b16 %v447
  %v549 = vunpack.c.l.b16 %v448
  %v550 = vunpack.c.l.b16 %v449
  %v551 = vunpack.c.l.b16 %v450
  %v552 = vunpack.c.l.b16 %v451
  %v553 = vunpack.c.l.b16 %v452
  %v554 = vunpack.c.l.b16 %v453
  %v555 = vunpack.c.l.b16 %v454
  %v556 = vunpack.c.l.b16 %v455
  %v557 = vunpack.c.l.b16 %v456
  %v558 = vunpack.c.l.b16 %v457
  %v559 = vunpack.c.l.b16 %v458
  %v560 = vunpack.c.l.b16 %v459
  %v561 = vunpack.c.l.b16 %v460
  %v562 = vunpack.c.l.b16 %v461
  %v563 = vunpack.c.l.b16 %v462
  %v564 = vunpack.c.l.b16 %v463
  %v565 = vunpack.c.l.b16 %v464
  %v566 = vunpack.c.l.b16 %v465
  %v567 = vunpack.c.l.b16 %v466
  %v568 = vunpack.c.l.b16 %v467
  %v569 = vunpack.c.l.b16 %v468
  %v570 = vunpack.c.l.b16 %v469
  %v571 = vunpack.c.l.b16 %v470
  %v572 = vunpack.c.l.b16 %v471
  %v573 = vunpack.c.l.b16 %v472
  %v574 = vunpack.c.l.b16 %v473
  %v575 = vunpack.c.l.b16 %v474
  %v576 = vunpack.c.l.b16 %v475
  %v577 = vunpack.c.l.b16 %v476
  %v578 = vunpack.c.l.b16 %v477
  %v579 = vunpack.c.l.b16 %v478
  %v580 = vunpack.c.l.b16 %v479
  %v581 = vpack.c.b16 %v534, %v533
  %v582 = vpack.c.b16 %v536, %v535
  %v583 = vpack.c.b16 %v538, %v537
  %v584 = vpack.c.b16 %v540, %v539
  %v585 = vpack.c.b16 %v542, %v541
  %v586 = vpack.c.b16 %v544, %v543
  %v587 = vpack.c.b16 %v546, %v545
  %v588 = vpack.c.b16 %v548, %v547
  %v589 = vpack.c.b16 %v550, %v549
  %v590 = vpack.c.b16 %v552, %v551
  %v591 = vpack.c.b16 %v554, %v553
  %v592 = vpack.c.b16 %v556, %v555
  %v593 = vpack.c.b16 %v558, %v557
  %v594 = vpack.c.b16 %v560, %v559
  %v595 = vpack.c.b16 %v562, %v561
  %v596 = vpack.c.b16 %v564, %v563
  %v597 = vpack.c.b16 %v566, %v565
  %v598 = vpack.c.b16 %v568, %v567
  %v599 = vpack.c.b16 %v570, %v569
  %v600 = vpack.c.b16 %v572, %v571
  %v601 = vpack.c.b16 %v574, %v573
  %v602 = vpack.c.b16 %v576, %v575
  %v603 = vpack.c.b16 %v578, %v577
  %v604 = vpack.c.b16 %v580, %v579
  %629 = vmatprep.subr.bf16.mxu0 0
  %630 = vmatpush1.bf16.msra.mxu0 %v581
  %631 = vmatprep.subr.bf16.mxu0 0
  %632 = vmatpush1.bf16.msra.mxu0 %v582
  %633 = vmatprep.subr.bf16.mxu0 0
  %634 = vmatpush1.bf16.msra.mxu0 %v583
  %635 = vmatprep.subr.bf16.mxu0 0
  %636 = vmatpush1.bf16.msra.mxu0 %v584
  %637 = vmatprep.subr.bf16.mxu0 0
  %638 = vmatpush1.bf16.msra.mxu0 %v585
  %639 = vmatprep.subr.bf16.mxu0 0
  %640 = vmatpush1.bf16.msra.mxu0 %v586
  %641 = vmatprep.subr.bf16.mxu0 0
  %642 = vmatpush1.bf16.msra.mxu0 %v587
  %643 = vmatprep.subr.bf16.mxu0 0
  %644 = vmatpush1.bf16.msra.mxu0 %v588
  %645 = vmatprep.subr.bf16.mxu0 0
  %646 = vmatpush1.bf16.msra.mxu0 %v589
  %647 = vmatprep.subr.bf16.mxu0 0
  %648 = vmatpush1.bf16.msra.mxu0 %v590
  %649 = vmatprep.subr.bf16.mxu0 0
  %650 = vmatpush1.bf16.msra.mxu0 %v591
  %651 = vmatprep.subr.bf16.mxu0 0
  %652 = vmatpush1.bf16.msra.mxu0 %v592
  %653 = vmatprep.subr.bf16.mxu0 0
  %654 = vmatpush1.bf16.msra.mxu0 %v593
  %655 = vmatprep.subr.bf16.mxu0 0
  %656 = vmatpush1.bf16.msra.mxu0 %v594
  %657 = vmatprep.subr.bf16.mxu0 0
  %658 = vmatpush1.bf16.msra.mxu0 %v595
  %659 = vmatprep.subr.bf16.mxu0 0
  %660 = vmatpush1.bf16.msra.mxu0 %v596
  %661 = vmatprep.mubr.bf16.mxu0 %v427
  %662 = vmatmul.mubr.bf16.gmra.mrb[0].mxu0 %v425
  %v663 = vpop.f32.mrb[0].mxu0
  %v664 = vadd.f32 %v484, %v663
  %v665 = vpop.f32.mrb[0].mxu0
  %v666 = vpop.f32.mrb[0].mxu0
  %v667 = vadd.f32 %v484, %v666
  %v668 = vpop.f32.mrb[0].mxu0
  %669 = vmatprep.mubr.bf16.mxu0 %v428
  %670 = vmatmul.mubr.bf16.gmra.mrb[0].mxu0 %v426
  %v671 = vpop.f32.mrb[0].mxu0
  %v672 = vadd.f32 %v484, %v671
  %v673 = vpop.f32.mrb[0].mxu0
  %v674 = vpop.f32.mrb[0].mxu0
  %v675 = vadd.f32 %v484, %v674
  %v676 = vpop.f32.mrb[0].mxu0
  %677 = vdwg.mxu0
  %678 = vmatprep.subr.bf16.mxu0 0
  %679 = vmatpush1.bf16.msra.mxu0 %v597
  %680 = vmatprep.subr.bf16.mxu0 0
  %681 = vmatpush1.bf16.msra.mxu0 %v598
  %682 = vmatprep.subr.bf16.mxu0 0
  %683 = vmatpush1.bf16.msra.mxu0 %v599
  %684 = vmatprep.subr.bf16.mxu0 0
  %685 = vmatpush1.bf16.msra.mxu0 %v600
  %686 = vmatprep.subr.bf16.mxu0 0
  %687 = vmatpush1.bf16.msra.mxu0 %v601
  %688 = vmatprep.subr.bf16.mxu0 0
  %689 = vmatpush1.bf16.msra.mxu0 %v602
  %690 = vmatprep.subr.bf16.mxu0 0
  %691 = vmatpush1.bf16.msra.mxu0 %v603
  %692 = vmatprep.subr.bf16.mxu0 0
  %693 = vmatpush1.bf16.msra.mxu0 %v604
  %694 = vmatprep.subr.bf16.mxu0 0
  %695 = vmatpush1.bf16.msra.mxu0 0
  %696 = vmatprep.subr.bf16.mxu0 0
  %697 = vmatpush1.bf16.msra.mxu0 0
  %698 = vmatprep.subr.bf16.mxu0 0
  %699 = vmatpush1.bf16.msra.mxu0 0
  %700 = vmatprep.subr.bf16.mxu0 0
  %701 = vmatpush1.bf16.msra.mxu0 0
  %702 = vmatprep.subr.bf16.mxu0 0
  %703 = vmatpush1.bf16.msra.mxu0 0
  %704 = vmatprep.subr.bf16.mxu0 0
  %705 = vmatpush1.bf16.msra.mxu0 0
  %706 = vmatprep.subr.bf16.mxu0 0
  %707 = vmatpush1.bf16.msra.mxu0 0
  %708 = vmatprep.subr.bf16.mxu0 0
  %709 = vmatpush1.bf16.msra.mxu0 0
  %710 = vmatprep.mubr.bf16.mxu0 0
  %711 = vmatmul.mubr.bf16.gmra.mrb[0].mxu0 %v429
  %v712 = vpop.f32.mrb[0].mxu0
  %v713 = vadd.f32 %v664, %v712
  %v714 = vpop.f32.mrb[0].mxu0
  %v715 = vpop.f32.mrb[0].mxu0
  %v716 = vadd.f32 %v667, %v715
  %v717 = vpop.f32.mrb[0].mxu0
  %718 = vmatprep.mubr.bf16.mxu0 0
  %719 = vmatmul.mubr.bf16.gmra.mrb[0].mxu0 %v430
  %v720 = vpop.f32.mrb[0].mxu0
  %v721 = vadd.f32 %v672, %v720
  %v722 = vpop.f32.mrb[0].mxu0
  %v723 = vpop.f32.mrb[0].mxu0
  %v724 = vadd.f32 %v675, %v723
  %v725 = vpop.f32.mrb[0].mxu0
  %726 = vdwg.mxu0
  %v727 = vld [vmem:[%s2 + $0x4] sm:$0x1]
  %v728 = vld [vmem:[%s2 + $0x5] sm:$0x1]
  %v729 = vadd.f32 %v713, %v716
  %v730 = vadd.f32 %v729, %v721
  %v731 = vadd.f32 %v730, %v724
  %v732 = vrot.slane %v731, 4
  %v733 = vadd.f32 %v731, %v732
  %v734 = vrot.slane %v733, 2
  %v735 = vadd.f32 %v733, %v734
  %v736 = vrot.slane %v735, 1
  %v737 = vadd.f32 %v735, %v736
  %738 = vrot.lane.b32.xlu0 %v737, 8
  %v739 = vpop.permute.xlu0 %738
  %v740 = vadd.f32 %v737, %v739
  %741 = vrot.lane.b32.xlu0 %v740, 16
  %v742 = vpop.permute.xlu0 %741
  %v743 = vadd.f32 %v740, %v742
  %744 = vrot.lane.b32.xlu0 %v743, 32
  %v745 = vpop.permute.xlu0 %744
  %v746 = vadd.f32 %v743, %v745
  %747 = vrot.lane.b32.xlu0 %v746, 64
  %v748 = vpop.permute.xlu0 %747
  %v749 = vadd.f32 %v746, %v748
  %v750 = vmul.f32 %v749, 0.001953125
  %v751 = vlaneseq
  %v752 = vshrl.u32 %v751, 7
  %v753 = vsub.s32 0, %v752
  %v754 = vrot.slane %v750, %v753
  %v755 = vsub.f32 %v713, %v754
  %v756 = vsub.f32 %v716, %v754
  %v757 = vsub.f32 %v721, %v754
  %v758 = vsub.f32 %v724, %v754
  %v759 = vmul.f32 %v755, %v755
  %v760 = vmul.f32 %v756, %v756
  %v761 = vmul.f32 %v757, %v757
  %v762 = vmul.f32 %v758, %v758
  %v763 = vadd.f32 %v759, %v760
  %v764 = vadd.f32 %v763, %v761
  %v765 = vadd.f32 %v764, %v762
  %v766 = vrot.slane %v765, 4
  %v767 = vadd.f32 %v765, %v766
  %v768 = vrot.slane %v767, 2
  %v769 = vadd.f32 %v767, %v768
  %v770 = vrot.slane %v769, 1
  %v771 = vadd.f32 %v769, %v770
  %772 = vrot.lane.b32.xlu0 %v771, 8
  %v773 = vpop.permute.xlu0 %772
  %v774 = vadd.f32 %v771, %v773
  %775 = vrot.lane.b32.xlu0 %v774, 16
  %v776 = vpop.permute.xlu0 %775
  %v777 = vadd.f32 %v774, %v776
  %778 = vrot.lane.b32.xlu0 %v777, 32
  %v779 = vpop.permute.xlu0 %778
  %v780 = vadd.f32 %v777, %v779
  %781 = vrot.lane.b32.xlu0 %v780, 64
  %v782 = vpop.permute.xlu0 %781
  %v783 = vadd.f32 %v780, %v782
  %v784 = vmul.f32 %v783, 0.001953125
  %v785 = vadd.f32 %v784, 1e-05
  %v786 = vrsqrt.pop %v785
  %v787 = vmul.f32 %v727, %v786
  %v788 = vlaneseq
  %v789 = vshrl.u32 %v788, 7
  %v790 = vsub.s32 0, %v789
  %v791 = vrot.slane %v787, %v790
  %v792 = vmul.f32 %v755, %v791
  %v793 = vmul.f32 %v756, %v791
  %v794 = vmul.f32 %v757, %v791
  %v795 = vmul.f32 %v758, %v791
  %v796 = vlaneseq
  %v797 = vshrl.u32 %v796, 7
  %v798 = vsub.s32 0, %v797
  %v799 = vrot.slane %v728, %v798
  %v800 = vadd.f32 %v792, %v799
  %v801 = vadd.f32 %v793, %v799
  %v802 = vadd.f32 %v794, %v799
  %v803 = vadd.f32 %v795, %v799
  %v804 = vld [vmem:[%s0 + $0x1] sm:$0xff]
  %v805 = vld [vmem:[%s0 + $0x9] sm:$0xff]
  %v806 = vld [vmem:[%s0 + $0x19] sm:$0xff]
  %v807 = vld [vmem:[%s0 + $0x21] sm:$0xff]
  %v808 = vadd.f32 %v800, %v804
  %v809 = vadd.f32 %v801, %v805
  %v810 = vadd.f32 %v802, %v806
  %v811 = vadd.f32 %v803, %v807
  %v812 = vmax.f32 %v808, 0.0
  %v813 = vmax.f32 %v809, 0.0
  %v814 = vmax.f32 %v810, 0.0
  %v815 = vmax.f32 %v811, 0.0
  %816 = vst [vmem:[%s3] sm:$0xff] %v812
  %817 = vst [vmem:[%s3 + $0x8] sm:$0xff] %v813
  %818 = vst [vmem:[%s3 + $0x10] sm:$0xff] %v814
  %819 = vst [vmem:[%s3 + $0x18] sm:$0xff] %v815
  // Predicated region
  $region14: #{residual_block.1} parent=0 // pred_check
    _
  $region15: #{residual_block.1} parent=0 // pred_check_branch
    %821 = sbr.rel (0) target = $region17
  $region16: #{residual_block.1} parent=0 // pred_region
    _
  $region17: #{residual_block.1} parent=0 // pred_fallthru
    _
  // Predicated region
  $region18: #{residual_block.1} parent=0 // pred_check
    _
  $region19: #{residual_block.1} parent=0 // pred_check_branch
    %823 = sbr.rel (0) target = $region21
  $region20: #{residual_block.1} parent=0 // pred_region
    _
  $region21: #{residual_block.1} parent=0 // pred_fallthru
    _

</llo_original>
